<compile_context>
chip_gen: v7x
topology: tpu7x:2x2x1
jax: 0.10.0
libtpu: 0.0.40
codegen_flags: <defaults>
</compile_context>

<pallas_src>
import jax
import jax.numpy as jnp
from jax import lax
from jax.experimental import pallas as pl
from jax.experimental.pallas import tpu as pltpu


# ---------------------------------------------------------------------------
# Fused Pallas kernel: all TGN graph-sum layers in one invocation
# ---------------------------------------------------------------------------
def _make_fused_kernel(layer_meta, emb, et_dim, num_neighbors, mm_dtype):
    """layer_meta: tuple of (n_src, n_dst, row_off, w_off) static ints per layer."""
    K = num_neighbors

    def kernel(feat_ref, idx_ref, et_ref, w_ref, b_ref, out_ref):
        cur = feat_ref[...].astype(jnp.float32)          # [n_src_0, emb] activations
        for k, (n_src, n_dst, r0, w0) in enumerate(layer_meta):
            x = cur.astype(mm_dtype)                     # [n_src, emb]

            # ---- Build stacked [A; S] selection matrix in-kernel -------------
            # A[i, n] = multiplicity of node n among i's neighbors (gather+sum),
            # S[i, n] = one-hot of i's self index (row select).  VPU work only.
            idx = idx_ref[r0:r0 + n_dst, :]              # [n_dst, K+1] int32
            col = lax.broadcasted_iota(jnp.int32, (n_dst, n_src), 1)
            a = jnp.zeros((n_dst, n_src), jnp.float32)
            for j in range(K):                           # K small & static
                a += (idx[:, j:j + 1] == col).astype(jnp.float32)
            s = (idx[:, K:K + 1] == col).astype(jnp.float32)
            sel = jnp.concatenate([a, s], axis=0).astype(mm_dtype)  # [2*n_dst, n_src]

            # ---- MXU op 1: neighbor-sum + self-select in ONE contraction -----
            g = jnp.dot(sel, x, preferred_element_type=jnp.float32)  # [2*n_dst, emb]
            sum_f = g[:n_dst, :]
            self_f = g[n_dst:, :]

            # ---- MXU op 2: linear_1 on (sum_feat | sum_edge|time), bias, ReLU
            lhs1 = jnp.concatenate(
                [sum_f.astype(mm_dtype), et_ref[r0:r0 + n_dst, :]], axis=-1)
            w1 = w_ref[w0:w0 + emb + et_dim, :]          # static, aligned slab slice
            h = (jnp.dot(lhs1, w1, preferred_element_type=jnp.float32)
                 + b_ref[2 * k:2 * k + 1, :])
            h = jnp.maximum(h, 0.0)                      # ReLU in f32

            # ---- MXU op 3: linear_2 on (self_feat | aggregate), bias ---------
            lhs2 = jnp.concatenate(
                [self_f.astype(mm_dtype), h.astype(mm_dtype)], axis=-1)
            w2 = w_ref[w0 + emb + et_dim:w0 + emb + et_dim + 2 * emb, :]
            cur = (jnp.dot(lhs2, w2, preferred_element_type=jnp.float32)
                   + b_ref[2 * k + 1:2 * k + 2, :])

        # TODO(synk): per perf review, a lane-dense [n_out*emb/128, 128] output slab
        # would make this an unmasked vst; skipped -- the required in-kernel relayout
        # isn't worth it at this n_out, revisit once n_out/emb grow.
        out_ref[...] = cur.astype(out_ref.dtype)

    return kernel


# ---------------------------------------------------------------------------
# One-time static parameter preparation (hoisted out of the per-call path)
# ---------------------------------------------------------------------------
def prepare_tgn_params(torch_params, mm_dtype=jnp.bfloat16):
    """torch_params[k] = (w1 [emb, emb+e+t], b1 [emb], w2 [emb, 2*emb], b2 [emb])
    with PyTorch Linear layout (W is [out, in]); concat order is
    (features | edge | time) for linear_1 and (self | aggregate) for linear_2.

    Returns:
      w_all: [num_layers*(emb+e+t + 2*emb), emb] mm_dtype   (x @ W layout)
      b_all: [2*num_layers, emb] float32  rows = b1_0, b2_0, b1_1, b2_1, ...
    """
    w_blocks, b_rows = [], []
    for (w1, b1, w2, b2) in torch_params:
        w_blocks.append(jnp.transpose(w1))   # [emb+e+t, emb]
        w_blocks.append(jnp.transpose(w2))   # [2*emb, emb]
        b_rows += [b1, b2]
    w_all = jnp.concatenate(w_blocks, axis=0).astype(mm_dtype)
    b_all = jnp.stack(b_rows, axis=0).astype(jnp.float32)
    return w_all, b_all


# ---------------------------------------------------------------------------
# Wrapper: minimal batch-dependent prep + single pallas_call
# ---------------------------------------------------------------------------
def tgn_fused_forward(features, neighbor_idx, self_idx, edge_feats, time_feats,
                      w_all, b_all, *, mm_dtype=jnp.bfloat16):
    num_layers = len(neighbor_idx)
    emb = features.shape[-1]
    num_neighbors = neighbor_idx[0].shape[1]
    et_dim = edge_feats[0].shape[-1] + time_feats[0].shape[-1]
    n_counts = [features.shape[0]] + [idx.shape[0] for idx in neighbor_idx]

    # Batch-dependent operands only: one (neighbor | self) int32 index slab and one
    # K-presummed edge|time slab, concatenated across layers along the row axis.
    idx_rows, et_rows, layer_meta = [], [], []
    row_off = 0
    w_rows_per_layer = (emb + et_dim) + 2 * emb
    for k in range(num_layers):
        n_src, n_dst = n_counts[k], n_counts[k + 1]
        idx_rows.append(jnp.concatenate(
            [neighbor_idx[k].astype(jnp.int32),
             self_idx[k].astype(jnp.int32)[:, None]], axis=-1))
        # sum_j x_j @ W == (sum_j x_j) @ W  ->  pre-sum edge|time over neighbors.
        et = jnp.concatenate([edge_feats[k], time_feats[k]], axis=-1)
        et_rows.append(jnp.sum(et.astype(jnp.float32), axis=1))      # [n_dst, e+t]
        layer_meta.append((n_src, n_dst, row_off, k * w_rows_per_layer))
        row_off += n_dst
    idx_all = jnp.concatenate(idx_rows, axis=0)                       # [sum n_dst, K+1]
    et_all = jnp.concatenate(et_rows, axis=0).astype(mm_dtype)        # [sum n_dst, e+t]

    inputs = [features.astype(jnp.float32), idx_all, et_all, w_all, b_all]
    n_out = n_counts[-1]

    def full_spec(arr):
        nd = arr.ndim
        return pl.BlockSpec(arr.shape, lambda i, _nd=nd: (0,) * _nd)

    kernel = _make_fused_kernel(tuple(layer_meta), emb, et_dim, num_neighbors,
                                mm_dtype)
    return pl.pallas_call(
        kernel,
        out_shape=jax.ShapeDtypeStruct((n_out, emb), jnp.float32),
        grid=(1,),   # whole sampled sub-graph fits in VMEM -> single launch
        in_specs=[full_spec(a) for a in inputs],
        out_specs=pl.BlockSpec((n_out, emb), lambda i: (0, 0)),
        compiler_params=pltpu.CompilerParams(
            dimension_semantics=("arbitrary",)),
    )(*inputs)


# ---------------------------------------------------------------------------
# Pure-JAX reference (same math as the PyTorch module, explicit concat/gather)
# ---------------------------------------------------------------------------
def tgn_forward_ref(features, neighbor_idx, self_idx, edge_feats, time_feats,
                    torch_params):
    out = features
    for k in range(len(torch_params)):
        w1, b1, w2, b2 = torch_params[k]
        neigh_f = out[neighbor_idx[k]]                                 # [n_dst, K, emb]
        agg = jnp.concatenate([neigh_f, edge_feats[k], time_feats[k]], axis=-1)
        agg_sum = jnp.sum(agg, axis=1)                                 # [n_dst, emb+e+t]
        h = jax.nn.relu(jnp.dot(agg_sum, w1.T, precision="highest") + b1)
        cat = jnp.concatenate([out[self_idx[k]], h], axis=-1)
        out = jnp.dot(cat, w2.T, precision="highest") + b2
    return out


# ---------------------------------------------------------------------------
# Main: deterministic synthetic data + parameters
# ---------------------------------------------------------------------------
if __name__ == "__main__":
    emb = 32            # embedding_dimension (== node_features_dim, as the module requires)
    edge_dim = 16       # edge_feature_dim
    time_dim = 16       # time_encoding_dim
    num_neighbors = 4   # fixed neighbor count per node
    num_layers = 2
    node_counts = [24, 16, 8]   # nodes per hop layer (layer 0 -> 1 -> 2)

    key = jax.random.PRNGKey(0)
    kit = iter(jax.random.split(key, 64))

    features = jax.random.normal(next(kit), (node_counts[0], emb), dtype=jnp.float32)

    neighbor_idx, self_idx, edge_feats, time_feats, torch_params = [], [], [], [], []
    for k in range(num_layers):
        n_src, n_dst = node_counts[k], node_counts[k + 1]
        neighbor_idx.append(
            jax.random.randint(next(kit), (n_dst, num_neighbors), 0, n_src))
        self_idx.append(jnp.arange(n_dst, dtype=jnp.int32))  # nested node layers
        edge_feats.append(
            jax.random.normal(next(kit), (n_dst, num_neighbors, edge_dim),
                              dtype=jnp.float32))
        time_feats.append(
            jax.random.normal(next(kit), (n_dst, num_neighbors, time_dim),
                              dtype=jnp.float32))

        # PyTorch Linear layout: W is [out, in]; concat order (feat | edge | time).
        w1 = 0.1 * jax.random.normal(next(kit), (emb, emb + edge_dim + time_dim),
                                     dtype=jnp.float32)
        b1 = 0.1 * jax.random.normal(next(kit), (emb,), dtype=jnp.float32)
        w2 = 0.1 * jax.random.normal(next(kit), (emb, 2 * emb), dtype=jnp.float32)
        b2 = 0.1 * jax.random.normal(next(kit), (emb,), dtype=jnp.float32)
        torch_params.append((w1, b1, w2, b2))

    ref = tgn_forward_ref(features, neighbor_idx, self_idx, edge_feats, time_feats,
                          torch_params)

    # f32 matmul-operand path: structural-correctness check.  The in-kernel f32
    # matmuls still go through the MXU (bf16-pass decomposition), not a
    # precision='highest' FMA, so this tolerance is moderate by design.
    w_f32, b_f32 = prepare_tgn_params(torch_params, mm_dtype=jnp.float32)
    out_f32 = jax.block_until_ready(
        tgn_fused_forward(features, neighbor_idx, self_idx, edge_feats, time_feats,
                          w_f32, b_f32, mm_dtype=jnp.float32))
    assert out_f32.shape == (node_counts[-1], emb)
    assert jnp.allclose(out_f32, ref, atol=2e-2, rtol=2e-2), "f32 mismatch"

    # bf16 matmul-operand path (deployed default on v5e/v6e/v7x): loose sanity check.
    w_bf16, b_bf16 = prepare_tgn_params(torch_params, mm_dtype=jnp.bfloat16)
    out_bf16 = jax.block_until_ready(
        tgn_fused_forward(features, neighbor_idx, self_idx, edge_feats, time_feats,
                          w_bf16, b_bf16, mm_dtype=jnp.bfloat16))
    assert out_bf16.shape == (node_counts[-1], emb)
    assert jnp.allclose(out_bf16, ref, atol=2.5e-1, rtol=5e-2), "bf16 mismatch"

    print("KERNEL_OK")
</pallas_src>

<mosaic_0001>
module attributes {stable_mosaic.version = 11 : i64} {
  func.func @kernel(%arg0: i32, %arg1: memref<24x32xf32, #tpu.memory_space<vmem>>, %arg2: memref<24x5xi32, #tpu.memory_space<vmem>>, %arg3: memref<24x32xf32, #tpu.memory_space<vmem>>, %arg4: memref<256x32xf32, #tpu.memory_space<vmem>>, %arg5: memref<4x32xf32, #tpu.memory_space<vmem>>, %arg6: memref<8x32xf32, #tpu.memory_space<vmem>>) attributes {dimension_semantics = [#tpu.dimension_semantics<arbitrary>], iteration_bounds = array<i64: 1>, scalar_prefetch = 0 : i64, scratch_operands = 0 : i64, tpu.core_type = #tpu.core_type<tc>, window_params = [{pipeline_mode = #tpu.pipeline_mode<synchronous>, transform_indices = @transform_0, window_bounds = array<i64: 24, 32>}, {pipeline_mode = #tpu.pipeline_mode<synchronous>, transform_indices = @transform_1, window_bounds = array<i64: 24, 5>}, {pipeline_mode = #tpu.pipeline_mode<synchronous>, transform_indices = @transform_2, window_bounds = array<i64: 24, 32>}, {pipeline_mode = #tpu.pipeline_mode<synchronous>, transform_indices = @transform_3, window_bounds = array<i64: 256, 32>}, {pipeline_mode = #tpu.pipeline_mode<synchronous>, transform_indices = @transform_4, window_bounds = array<i64: 4, 32>}, {pipeline_mode = #tpu.pipeline_mode<synchronous>, transform_indices = @transform_5, window_bounds = array<i64: 8, 32>}]} {
    %c0 = arith.constant 0 : index
    %c0_0 = arith.constant 0 : index
    %0 = vector.load %arg1[%c0, %c0_0] : memref<24x32xf32, #tpu.memory_space<vmem>>, vector<24x32xf32>
    %c0_1 = arith.constant 0 : index
    %c0_2 = arith.constant 0 : index
    %1 = vector.load %arg2[%c0_1, %c0_2] : memref<24x5xi32, #tpu.memory_space<vmem>>, vector<16x5xi32>
    %2 = tpu.iota {dimensions = array<i32: 1>} : vector<16x24xi32>
    %cst = arith.constant 0.000000e+00 : f32
    %3 = vector.broadcast %cst : f32 to vector<16x24xf32>
    %4 = vector.extract_strided_slice %1 {offsets = [0, 0], sizes = [16, 1], strides = [1, 1]} : vector<16x5xi32> to vector<16x1xi32>
    %5 = vector.broadcast %4 : vector<16x1xi32> to vector<16x24xi32>
    %6 = arith.cmpi eq, %5, %2 : vector<16x24xi32>
    %7 = arith.extui %6 : vector<16x24xi1> to vector<16x24xi32>
    %8 = arith.sitofp %7 : vector<16x24xi32> to vector<16x24xf32>
    %9 = arith.addf %3, %8 : vector<16x24xf32>
    %10 = vector.extract_strided_slice %1 {offsets = [0, 1], sizes = [16, 1], strides = [1, 1]} : vector<16x5xi32> to vector<16x1xi32>
    %11 = vector.broadcast %10 : vector<16x1xi32> to vector<16x24xi32>
    %12 = arith.cmpi eq, %11, %2 : vector<16x24xi32>
    %13 = arith.extui %12 : vector<16x24xi1> to vector<16x24xi32>
    %14 = arith.sitofp %13 : vector<16x24xi32> to vector<16x24xf32>
    %15 = arith.addf %9, %14 : vector<16x24xf32>
    %16 = vector.extract_strided_slice %1 {offsets = [0, 2], sizes = [16, 1], strides = [1, 1]} : vector<16x5xi32> to vector<16x1xi32>
    %17 = vector.broadcast %16 : vector<16x1xi32> to vector<16x24xi32>
    %18 = arith.cmpi eq, %17, %2 : vector<16x24xi32>
    %19 = arith.extui %18 : vector<16x24xi1> to vector<16x24xi32>
    %20 = arith.sitofp %19 : vector<16x24xi32> to vector<16x24xf32>
    %21 = arith.addf %15, %20 : vector<16x24xf32>
    %22 = vector.extract_strided_slice %1 {offsets = [0, 3], sizes = [16, 1], strides = [1, 1]} : vector<16x5xi32> to vector<16x1xi32>
    %23 = vector.broadcast %22 : vector<16x1xi32> to vector<16x24xi32>
    %24 = arith.cmpi eq, %23, %2 : vector<16x24xi32>
    %25 = arith.extui %24 : vector<16x24xi1> to vector<16x24xi32>
    %26 = arith.sitofp %25 : vector<16x24xi32> to vector<16x24xf32>
    %27 = arith.addf %21, %26 : vector<16x24xf32>
    %28 = vector.extract_strided_slice %1 {offsets = [0, 4], sizes = [16, 1], strides = [1, 1]} : vector<16x5xi32> to vector<16x1xi32>
    %29 = vector.broadcast %28 : vector<16x1xi32> to vector<16x24xi32>
    %30 = arith.cmpi eq, %29, %2 : vector<16x24xi32>
    %31 = arith.extui %30 : vector<16x24xi1> to vector<16x24xi32>
    %32 = arith.sitofp %31 : vector<16x24xi32> to vector<16x24xf32>
    %33 = tpu.concatenate %27, %32 in 0 : vector<16x24xf32>, vector<16x24xf32> -> vector<32x24xf32>
    %cst_3 = arith.constant dense<0.000000e+00> : vector<32x32xf32>
    %34 = tpu.matmul %33, %0, %cst_3 {dimension_numbers = #tpu.dot_dimension_numbers<[1], [0], [0], [1], [0, 0, 1, 1], [], []>} : vector<32x24xf32>, vector<24x32xf32>, vector<32x32xf32> -> vector<32x32xf32>
    %35 = vector.extract_strided_slice %34 {offsets = [0, 0], sizes = [16, 32], strides = [1, 1]} : vector<32x32xf32> to vector<16x32xf32>
    %36 = vector.extract_strided_slice %34 {offsets = [16, 0], sizes = [16, 32], strides = [1, 1]} : vector<32x32xf32> to vector<16x32xf32>
    %c0_4 = arith.constant 0 : index
    %c0_5 = arith.constant 0 : index
    %37 = vector.load %arg3[%c0_4, %c0_5] : memref<24x32xf32, #tpu.memory_space<vmem>>, vector<16x32xf32>
    %38 = tpu.concatenate %35, %37 in 1 : vector<16x32xf32>, vector<16x32xf32> -> vector<16x64xf32>
    %c0_6 = arith.constant 0 : index
    %c0_7 = arith.constant 0 : index
    %39 = vector.load %arg4[%c0_6, %c0_7] : memref<256x32xf32, #tpu.memory_space<vmem>>, vector<64x32xf32>
    %cst_8 = arith.constant dense<0.000000e+00> : vector<16x32xf32>
    %40 = tpu.matmul %38, %39, %cst_8 {dimension_numbers = #tpu.dot_dimension_numbers<[1], [0], [0], [1], [0, 0, 1, 1], [], []>} : vector<16x64xf32>, vector<64x32xf32>, vector<16x32xf32> -> vector<16x32xf32>
    %c0_9 = arith.constant 0 : index
    %c0_10 = arith.constant 0 : index
    %41 = vector.load %arg5[%c0_9, %c0_10] : memref<4x32xf32, #tpu.memory_space<vmem>>, vector<1x32xf32>
    %42 = vector.broadcast %41 : vector<1x32xf32> to vector<16x32xf32>
    %43 = arith.addf %40, %42 : vector<16x32xf32>
    %cst_11 = arith.constant 0.000000e+00 : f32
    %44 = vector.broadcast %cst_11 : f32 to vector<16x32xf32>
    %45 = arith.maximumf %43, %44 : vector<16x32xf32>
    %46 = tpu.concatenate %36, %45 in 1 : vector<16x32xf32>, vector<16x32xf32> -> vector<16x64xf32>
    %c64 = arith.constant 64 : index
    %c0_12 = arith.constant 0 : index
    %47 = vector.load %arg4[%c64, %c0_12] : memref<256x32xf32, #tpu.memory_space<vmem>>, vector<64x32xf32>
    %cst_13 = arith.constant dense<0.000000e+00> : vector<16x32xf32>
    %48 = tpu.matmul %46, %47, %cst_13 {dimension_numbers = #tpu.dot_dimension_numbers<[1], [0], [0], [1], [0, 0, 1, 1], [], []>} : vector<16x64xf32>, vector<64x32xf32>, vector<16x32xf32> -> vector<16x32xf32>
    %c1 = arith.constant 1 : index
    %c0_14 = arith.constant 0 : index
    %49 = vector.load %arg5[%c1, %c0_14] : memref<4x32xf32, #tpu.memory_space<vmem>>, vector<1x32xf32>
    %50 = vector.broadcast %49 : vector<1x32xf32> to vector<16x32xf32>
    %51 = arith.addf %48, %50 : vector<16x32xf32>
    %c16 = arith.constant 16 : index
    %c0_15 = arith.constant 0 : index
    %52 = vector.load %arg2[%c16, %c0_15] : memref<24x5xi32, #tpu.memory_space<vmem>>, vector<8x5xi32>
    %53 = tpu.iota {dimensions = array<i32: 1>} : vector<8x16xi32>
    %cst_16 = arith.constant 0.000000e+00 : f32
    %54 = vector.broadcast %cst_16 : f32 to vector<8x16xf32>
    %55 = vector.extract_strided_slice %52 {offsets = [0, 0], sizes = [8, 1], strides = [1, 1]} : vector<8x5xi32> to vector<8x1xi32>
    %56 = vector.broadcast %55 : vector<8x1xi32> to vector<8x16xi32>
    %57 = arith.cmpi eq, %56, %53 : vector<8x16xi32>
    %58 = arith.extui %57 : vector<8x16xi1> to vector<8x16xi32>
    %59 = arith.sitofp %58 : vector<8x16xi32> to vector<8x16xf32>
    %60 = arith.addf %54, %59 : vector<8x16xf32>
    %61 = vector.extract_strided_slice %52 {offsets = [0, 1], sizes = [8, 1], strides = [1, 1]} : vector<8x5xi32> to vector<8x1xi32>
    %62 = vector.broadcast %61 : vector<8x1xi32> to vector<8x16xi32>
    %63 = arith.cmpi eq, %62, %53 : vector<8x16xi32>
    %64 = arith.extui %63 : vector<8x16xi1> to vector<8x16xi32>
    %65 = arith.sitofp %64 : vector<8x16xi32> to vector<8x16xf32>
    %66 = arith.addf %60, %65 : vector<8x16xf32>
    %67 = vector.extract_strided_slice %52 {offsets = [0, 2], sizes = [8, 1], strides = [1, 1]} : vector<8x5xi32> to vector<8x1xi32>
    %68 = vector.broadcast %67 : vector<8x1xi32> to vector<8x16xi32>
    %69 = arith.cmpi eq, %68, %53 : vector<8x16xi32>
    %70 = arith.extui %69 : vector<8x16xi1> to vector<8x16xi32>
    %71 = arith.sitofp %70 : vector<8x16xi32> to vector<8x16xf32>
    %72 = arith.addf %66, %71 : vector<8x16xf32>
    %73 = vector.extract_strided_slice %52 {offsets = [0, 3], sizes = [8, 1], strides = [1, 1]} : vector<8x5xi32> to vector<8x1xi32>
    %74 = vector.broadcast %73 : vector<8x1xi32> to vector<8x16xi32>
    %75 = arith.cmpi eq, %74, %53 : vector<8x16xi32>
    %76 = arith.extui %75 : vector<8x16xi1> to vector<8x16xi32>
    %77 = arith.sitofp %76 : vector<8x16xi32> to vector<8x16xf32>
    %78 = arith.addf %72, %77 : vector<8x16xf32>
    %79 = vector.extract_strided_slice %52 {offsets = [0, 4], sizes = [8, 1], strides = [1, 1]} : vector<8x5xi32> to vector<8x1xi32>
    %80 = vector.broadcast %79 : vector<8x1xi32> to vector<8x16xi32>
    %81 = arith.cmpi eq, %80, %53 : vector<8x16xi32>
    %82 = arith.extui %81 : vector<8x16xi1> to vector<8x16xi32>
    %83 = arith.sitofp %82 : vector<8x16xi32> to vector<8x16xf32>
    %84 = tpu.concatenate %78, %83 in 0 : vector<8x16xf32>, vector<8x16xf32> -> vector<16x16xf32>
    %cst_17 = arith.constant dense<0.000000e+00> : vector<16x32xf32>
    %85 = tpu.matmul %84, %51, %cst_17 {dimension_numbers = #tpu.dot_dimension_numbers<[1], [0], [0], [1], [0, 0, 1, 1], [], []>} : vector<16x16xf32>, vector<16x32xf32>, vector<16x32xf32> -> vector<16x32xf32>
    %86 = vector.extract_strided_slice %85 {offsets = [0, 0], sizes = [8, 32], strides = [1, 1]} : vector<16x32xf32> to vector<8x32xf32>
    %87 = vector.extract_strided_slice %85 {offsets = [8, 0], sizes = [8, 32], strides = [1, 1]} : vector<16x32xf32> to vector<8x32xf32>
    %c16_18 = arith.constant 16 : index
    %c0_19 = arith.constant 0 : index
    %88 = vector.load %arg3[%c16_18, %c0_19] : memref<24x32xf32, #tpu.memory_space<vmem>>, vector<8x32xf32>
    %89 = tpu.concatenate %86, %88 in 1 : vector<8x32xf32>, vector<8x32xf32> -> vector<8x64xf32>
    %c128 = arith.constant 128 : index
    %c0_20 = arith.constant 0 : index
    %90 = vector.load %arg4[%c128, %c0_20] : memref<256x32xf32, #tpu.memory_space<vmem>>, vector<64x32xf32>
    %cst_21 = arith.constant dense<0.000000e+00> : vector<8x32xf32>
    %91 = tpu.matmul %89, %90, %cst_21 {dimension_numbers = #tpu.dot_dimension_numbers<[1], [0], [0], [1], [0, 0, 1, 1], [], []>} : vector<8x64xf32>, vector<64x32xf32>, vector<8x32xf32> -> vector<8x32xf32>
    %c2 = arith.constant 2 : index
    %c0_22 = arith.constant 0 : index
    %92 = vector.load %arg5[%c2, %c0_22] : memref<4x32xf32, #tpu.memory_space<vmem>>, vector<1x32xf32>
    %93 = vector.broadcast %92 : vector<1x32xf32> to vector<8x32xf32>
    %94 = arith.addf %91, %93 : vector<8x32xf32>
    %cst_23 = arith.constant 0.000000e+00 : f32
    %95 = vector.broadcast %cst_23 : f32 to vector<8x32xf32>
    %96 = arith.maximumf %94, %95 : vector<8x32xf32>
    %97 = tpu.concatenate %87, %96 in 1 : vector<8x32xf32>, vector<8x32xf32> -> vector<8x64xf32>
    %c192 = arith.constant 192 : index
    %c0_24 = arith.constant 0 : index
    %98 = vector.load %arg4[%c192, %c0_24] : memref<256x32xf32, #tpu.memory_space<vmem>>, vector<64x32xf32>
    %cst_25 = arith.constant dense<0.000000e+00> : vector<8x32xf32>
    %99 = tpu.matmul %97, %98, %cst_25 {dimension_numbers = #tpu.dot_dimension_numbers<[1], [0], [0], [1], [0, 0, 1, 1], [], []>} : vector<8x64xf32>, vector<64x32xf32>, vector<8x32xf32> -> vector<8x32xf32>
    %c3 = arith.constant 3 : index
    %c0_26 = arith.constant 0 : index
    %100 = vector.load %arg5[%c3, %c0_26] : memref<4x32xf32, #tpu.memory_space<vmem>>, vector<1x32xf32>
    %101 = vector.broadcast %100 : vector<1x32xf32> to vector<8x32xf32>
    %102 = arith.addf %99, %101 : vector<8x32xf32>
    %c0_27 = arith.constant 0 : index
    %c0_28 = arith.constant 0 : index
    %103 = vector.load %arg6[%c0_27, %c0_28] : memref<8x32xf32, #tpu.memory_space<vmem>>, vector<8x32xf32>
    tpu.vector_store %arg6[%c0_27, %c0_28], %102 {strides = array<i32>} : memref<8x32xf32, #tpu.memory_space<vmem>>, vector<8x32xf32>,
    return
  }
  func.func @transform_0(%arg0: i32) -> (i32, i32) {
    %c0_i32 = arith.constant 0 : i32
    %c0_i32_0 = arith.constant 0 : i32
    %c0_i32_1 = arith.constant 0 : i32
    return %c0_i32, %c0_i32_0 : i32, i32
  }
  func.func @transform_1(%arg0: i32) -> (i32, i32) {
    %c0_i32 = arith.constant 0 : i32
    %c0_i32_0 = arith.constant 0 : i32
    %c0_i32_1 = arith.constant 0 : i32
    return %c0_i32, %c0_i32_0 : i32, i32
  }
  func.func @transform_2(%arg0: i32) -> (i32, i32) {
    %c0_i32 = arith.constant 0 : i32
    %c0_i32_0 = arith.constant 0 : i32
    %c0_i32_1 = arith.constant 0 : i32
    return %c0_i32, %c0_i32_0 : i32, i32
  }
  func.func @transform_3(%arg0: i32) -> (i32, i32) {
    %c0_i32 = arith.constant 0 : i32
    %c0_i32_0 = arith.constant 0 : i32
    %c0_i32_1 = arith.constant 0 : i32
    return %c0_i32, %c0_i32_0 : i32, i32
  }
  func.func @transform_4(%arg0: i32) -> (i32, i32) {
    %c0_i32 = arith.constant 0 : i32
    %c0_i32_0 = arith.constant 0 : i32
    %c0_i32_1 = arith.constant 0 : i32
    return %c0_i32, %c0_i32_0 : i32, i32
  }
  func.func @transform_5(%arg0: i32) -> (i32, i32) {
    %c0_i32 = arith.constant 0 : i32
    %c0_i32_0 = arith.constant 0 : i32
    %c0_i32_1 = arith.constant 0 : i32
    return %c0_i32, %c0_i32_0 : i32, i32
  }
}

</mosaic_0001>

<llo_original>
// kernel: tpu_custom_call.1
$region0: #{tpu_custom_call.1}
  #allocation0 [shape = 'u32[]', space=smem, size = 0x4, offset = 0x4, fixed_abs, tag = 'smem constant byte address 0x4 - core index']
  #allocation1 [shape = 'u32[144,128]{1,0:T(1,128)}', space=vmem, size = 0x12000, scoped, tag = 'internal scratch']
  %s0 = inlined_call_operand.vmem [shape: f32[24,32], index: 0, kind: input, shape index: {}]
  %s1 = inlined_call_operand.vmem [shape: s32[24,5], index: 1, kind: input, shape index: {}]
  %s2 = inlined_call_operand.vmem [shape: f32[24,32], index: 2, kind: input, shape index: {}]
  %s3 = inlined_call_operand.vmem [shape: f32[256,32], index: 3, kind: input, shape index: {}]
  %s4 = inlined_call_operand.vmem [shape: f32[4,32], index: 4, kind: input, shape index: {}]
  %s5 = inlined_call_operand.hbm [shape: f32[8,32], index: 5, kind: output, shape index: {}]
  %s6 = sld [smem:[#allocation0]]
  $region30: #{tpu_custom_call.1} parent=0
    _
  %s8 = ssub.s32 1, %s6
  %s9 = scalar_select 0, %s8, %s6
  $region1: #{tpu_custom_call.1} parent=0
    #allocation2 [shape = 'u8[4096]{0}', space=vmem, size = 0x1000, scoped, tag = 'output window, operand 0, single buffered']
    #allocation3 [shape = 's32[1]{0}', space=sflag, size = 0x4, scoped, tag = 'scoped memory for tpu_custom_call.1']
    %10 = vsyncpa [#allocation3], 0
    // Predicated region
    $region2: #{tpu_custom_call.1} parent=1 // pred_check
      _
    $region3: #{tpu_custom_call.1} parent=1 // pred_check_branch
      %12 = sbr.rel (0) target = $region5
    $region4: #{tpu_custom_call.1} parent=1 // pred_region
      _
    $region5: #{tpu_custom_call.1} parent=1 // pred_fallthru
      _
    // Predicated region
    $region6: #{tpu_custom_call.1} parent=1 // pred_check
      _
    $region7: #{tpu_custom_call.1} parent=1 // pred_check_branch
      %14 = sbr.rel (0) target = $region9
    $region8: #{tpu_custom_call.1} parent=1 // pred_region
      _
    $region9: #{tpu_custom_call.1} parent=1 // pred_fallthru
      _
    // Predicated region
    $region10: #{tpu_custom_call.1} parent=1 // pred_check
      _
    $region11: #{tpu_custom_call.1} parent=1 // pred_check_branch
      %16 = sbr.rel (0) target = $region13
    $region12: #{tpu_custom_call.1} parent=1 // pred_region
      _
    $region13: #{tpu_custom_call.1} parent=1 // pred_fallthru
      _
    // Predicated region
    $region14: #{tpu_custom_call.1} parent=1 // pred_check
      _
    $region15: #{tpu_custom_call.1} parent=1 // pred_check_branch
      %18 = sbr.rel (0) target = $region17
    $region16: #{tpu_custom_call.1} parent=1 // pred_region
      _
    $region17: #{tpu_custom_call.1} parent=1 // pred_fallthru
      _
    // Predicated region
    $region18: #{tpu_custom_call.1} parent=1 // pred_check
      _
    $region19: #{tpu_custom_call.1} parent=1 // pred_check_branch
      %20 = sbr.rel (0) target = $region21
    $region20: #{tpu_custom_call.1} parent=1 // pred_region
      _
    $region21: #{tpu_custom_call.1} parent=1 // pred_fallthru
      _
    %v21 = vld [vmem:[%s0] sm:$0xff]
    %v22 = vld [vmem:[%s0 + $0x8] sm:$0xff]
    %v23 = vld [vmem:[%s0 + $0x10] sm:$0xff]
    %v24 = vld [vmem:[%s1] sm:$0xff]
    %v25 = vld [vmem:[%s1 + $0x8] sm:$0xff]
    %v26 = vlaneseq
    %v27 = vand.u32 %v26, 127
    %28 = vset.pattern.permute.xlu0 0
    %29 = vperm.xlu0 %28, %v24
    %v30 = vpop.permute.xlu0 %29
    %31 = vset.pattern.permute.xlu0 0
    %32 = vperm.xlu0 %31, %v25
    %v33 = vpop.permute.xlu0 %32
    %vm34 = vcmp.eq.s32.totalorder %v30, %v27
    %vm35 = vcmp.eq.s32.totalorder %v33, %v27
    %v36 = vsel %vm34, 1, 0
    %v37 = vsel %vm35, 1, 0
    %v38 = vcvt.s32.f32 %v36
    %v39 = vcvt.s32.f32 %v37
    %v40 = vadd.f32 %v38, 0.0
    %v41 = vadd.f32 %v39, 0.0
    %42 = vset.pattern.permute.xlu0 1
    %43 = vperm.xlu0 %42, %v24
    %v44 = vpop.permute.xlu0 %43
    %45 = vset.pattern.permute.xlu0 1
    %46 = vperm.xlu0 %45, %v25
    %v47 = vpop.permute.xlu0 %46
    %vm48 = vcmp.eq.s32.totalorder %v44, %v27
    %vm49 = vcmp.eq.s32.totalorder %v47, %v27
    %v50 = vsel %vm48, 1, 0
    %v51 = vsel %vm49, 1, 0
    %v52 = vcvt.s32.f32 %v50
    %v53 = vcvt.s32.f32 %v51
    %v54 = vadd.f32 %v40, %v52
    %v55 = vadd.f32 %v41, %v53
    %56 = vset.pattern.permute.xlu0 2
    %57 = vperm.xlu0 %56, %v24
    %v58 = vpop.permute.xlu0 %57
    %59 = vset.pattern.permute.xlu0 2
    %60 = vperm.xlu0 %59, %v25
    %v61 = vpop.permute.xlu0 %60
    %vm62 = vcmp.eq.s32.totalorder %v58, %v27
    %vm63 = vcmp.eq.s32.totalorder %v61, %v27
    %v64 = vsel %vm62, 1, 0
    %v65 = vsel %vm63, 1, 0
    %v66 = vcvt.s32.f32 %v64
    %v67 = vcvt.s32.f32 %v65
    %v68 = vadd.f32 %v54, %v66
    %v69 = vadd.f32 %v55, %v67
    %70 = vset.pattern.permute.xlu0 3
    %71 = vperm.xlu0 %70, %v24
    %v72 = vpop.permute.xlu0 %71
    %73 = vset.pattern.permute.xlu0 3
    %74 = vperm.xlu0 %73, %v25
    %v75 = vpop.permute.xlu0 %74
    %vm76 = vcmp.eq.s32.totalorder %v72, %v27
    %vm77 = vcmp.eq.s32.totalorder %v75, %v27
    %v78 = vsel %vm76, 1, 0
    %v79 = vsel %vm77, 1, 0
    %v80 = vcvt.s32.f32 %v78
    %v81 = vcvt.s32.f32 %v79
    %v82 = vadd.f32 %v68, %v80
    %v83 = vadd.f32 %v69, %v81
    %84 = vset.pattern.permute.xlu0 4
    %85 = vperm.xlu0 %84, %v24
    %v86 = vpop.permute.xlu0 %85
    %87 = vset.pattern.permute.xlu0 4
    %88 = vperm.xlu0 %87, %v25
    %v89 = vpop.permute.xlu0 %88
    %vm90 = vcmp.eq.s32.totalorder %v86, %v27
    %vm91 = vcmp.eq.s32.totalorder %v89, %v27
    %v92 = vsel %vm90, 1, 0
    %v93 = vsel %vm91, 1, 0
    %v94 = vcvt.s32.f32 %v92
    %v95 = vcvt.s32.f32 %v93
    %vm96 = vcmask 195584
    %v98 = vsel %vm96, %v82, 0
    %v101 = vsel %vm96, %v83, 0
    %v104 = vsel %vm96, %v94, 0
    %v107 = vsel %vm96, %v95, 0
    %109 = vmatprep.subr.mxu0 0.0
    %110 = vmatpush1.msra.mxu0 %v21
    %111 = vmatprep.subr.mxu0 0.0
    %112 = vmatpush1.msra.mxu0 %v22
    %113 = vmatprep.subr.mxu0 0.0
    %114 = vmatpush1.msra.mxu0 %v23
    %115 = vmatprep.subr.mxu0 0.0
    %116 = vmatpush1.msra.mxu0 0.0
    %117 = vmatprep.subr.mxu0 0.0
    %118 = vmatpush1.msra.mxu0 0.0
    %119 = vmatprep.subr.mxu0 0.0
    %120 = vmatpush1.msra.mxu0 0.0
    %121 = vmatprep.subr.mxu0 0.0
    %122 = vmatpush1.msra.mxu0 0.0
    %123 = vmatprep.subr.mxu0 0.0
    %124 = vmatpush1.msra.mxu0 0.0
    %125 = vmatprep.subr.mxu0 0.0
    %126 = vmatpush1.msra.mxu0 0.0
    %127 = vmatprep.subr.mxu0 0.0
    %128 = vmatpush1.msra.mxu0 0.0
    %129 = vmatprep.subr.mxu0 0.0
    %130 = vmatpush1.msra.mxu0 0.0
    %131 = vmatprep.subr.mxu0 0.0
    %132 = vmatpush1.msra.mxu0 0.0
    %133 = vmatprep.subr.mxu0 0.0
    %134 = vmatpush1.msra.mxu0 0.0
    %135 = vmatprep.subr.mxu0 0.0
    %136 = vmatpush1.msra.mxu0 0.0
    %137 = vmatprep.subr.mxu0 0.0
    %138 = vmatpush1.msra.mxu0 0.0
    %139 = vmatprep.subr.mxu0 0.0
    %140 = vmatpush1.msra.mxu0 0.0
    %141 = vmatprep.subr.mxu0 0.0
    %142 = vmatpush1.msra.mxu0 0.0
    %143 = vmatprep.subr.mxu0 0.0
    %144 = vmatpush1.msra.mxu0 0.0
    %145 = vmatprep.subr.mxu0 0.0
    %146 = vmatpush1.msra.mxu0 0.0
    %147 = vmatprep.subr.mxu0 0.0
    %148 = vmatpush1.msra.mxu0 0.0
    %149 = vmatprep.subr.mxu0 0.0
    %150 = vmatpush1.msra.mxu0 0.0
    %151 = vmatprep.subr.mxu0 0.0
    %152 = vmatpush1.msra.mxu0 0.0
    %153 = vmatprep.subr.mxu0 0.0
    %154 = vmatpush1.msra.mxu0 0.0
    %155 = vmatprep.subr.mxu0 0.0
    %156 = vmatpush1.msra.mxu0 0.0
    %157 = vmatprep.subr.mxu0 0.0
    %158 = vmatpush1.msra.mxu0 0.0
    %159 = vmatprep.subr.mxu0 0.0
    %160 = vmatpush1.msra.mxu0 0.0
    %161 = vmatprep.subr.mxu0 0.0
    %162 = vmatpush1.msra.mxu0 0.0
    %163 = vmatprep.subr.mxu0 0.0
    %164 = vmatpush1.msra.mxu0 0.0
    %165 = vmatprep.subr.mxu0 0.0
    %166 = vmatpush1.msra.mxu0 0.0
    %167 = vmatprep.subr.mxu0 0.0
    %168 = vmatpush1.msra.mxu0 0.0
    %169 = vmatprep.subr.mxu0 0.0
    %170 = vmatpush1.msra.mxu0 0.0
    %171 = vmatprep.subr.mxu0 0.0
    %172 = vmatpush1.msra.mxu0 0.0
    %173 = vmatprep.mubr.f32.mxu0 0.0
    %174 = vmatmul.mubr.f32.gmra.mrb[0].mxu0 %v98
    %v175 = vpop.f32.mrb[0].mxu0
    %v176 = vadd.f32 0.0, %v175
    %v177 = vpop.f32.mrb[0].mxu0
    %178 = vmatprep.mubr.f32.mxu0 0.0
    %179 = vmatmul.mubr.f32.gmra.mrb[0].mxu0 %v101
    %v180 = vpop.f32.mrb[0].mxu0
    %v181 = vadd.f32 0.0, %v180
    %v182 = vpop.f32.mrb[0].mxu0
    %183 = vmatprep.mubr.f32.mxu0 0.0
    %184 = vmatmul.mubr.f32.gmra.mrb[0].mxu0 %v104
    %v185 = vpop.f32.mrb[0].mxu0
    %v186 = vadd.f32 0.0, %v185
    %v187 = vpop.f32.mrb[0].mxu0
    %188 = vmatprep.mubr.f32.mxu0 0.0
    %189 = vmatmul.mubr.f32.gmra.mrb[0].mxu0 %v107
    %v190 = vpop.f32.mrb[0].mxu0
    %v191 = vadd.f32 0.0, %v190
    %v192 = vpop.f32.mrb[0].mxu0
    %193 = vdwg.mxu0
    %v194 = vld [vmem:[%s2] sm:$0xff]
    %v195 = vld [vmem:[%s2 + $0x8] sm:$0xff]
    %198 = vrot.lane.b32.xlu0 %v194, 32
    %v199 = vpop.permute.xlu0 %198
    %200 = vrot.lane.b32.xlu0 %v195, 32
    %v201 = vpop.permute.xlu0 %200
    %vm204 = vcmask 261120
    %v205 = vsel %vm204, %v176, %v199
    %v206 = vsel %vm204, %v181, %v201
    %v207 = vld [vmem:[%s3] sm:$0xff]
    %v208 = vld [vmem:[%s3 + $0x8] sm:$0xff]
    %v209 = vld [vmem:[%s3 + $0x10] sm:$0xff]
    %v210 = vld [vmem:[%s3 + $0x18] sm:$0xff]
    %v211 = vld [vmem:[%s3 + $0x20] sm:$0xff]
    %v212 = vld [vmem:[%s3 + $0x28] sm:$0xff]
    %v213 = vld [vmem:[%s3 + $0x30] sm:$0xff]
    %v214 = vld [vmem:[%s3 + $0x38] sm:$0xff]
    %v215 = vld [vmem:[%s4] sm:$0x1]
    %v216 = vlaneseq
    %v217 = vshrl.u32 %v216, 7
    %v218 = vsub.s32 0, %v217
    %v219 = vrot.slane %v215, %v218
    %vm220 = vcmask 523264
    %v222 = vsel %vm220, %v205, 0
    %v225 = vsel %vm220, %v206, 0
    %227 = vmatprep.subr.mxu0 0.0
    %228 = vmatpush1.msra.mxu0 %v207
    %229 = vmatprep.subr.mxu0 0.0
    %230 = vmatpush1.msra.mxu0 %v208
    %231 = vmatprep.subr.mxu0 0.0
    %232 = vmatpush1.msra.mxu0 %v209
    %233 = vmatprep.subr.mxu0 0.0
    %234 = vmatpush1.msra.mxu0 %v210
    %235 = vmatprep.subr.mxu0 0.0
    %236 = vmatpush1.msra.mxu0 %v211
    %237 = vmatprep.subr.mxu0 0.0
    %238 = vmatpush1.msra.mxu0 %v212
    %239 = vmatprep.subr.mxu0 0.0
    %240 = vmatpush1.msra.mxu0 %v213
    %241 = vmatprep.subr.mxu0 0.0
    %242 = vmatpush1.msra.mxu0 %v214
    %243 = vmatprep.subr.mxu0 0.0
    %244 = vmatpush1.msra.mxu0 0.0
    %245 = vmatprep.subr.mxu0 0.0
    %246 = vmatpush1.msra.mxu0 0.0
    %247 = vmatprep.subr.mxu0 0.0
    %248 = vmatpush1.msra.mxu0 0.0
    %249 = vmatprep.subr.mxu0 0.0
    %250 = vmatpush1.msra.mxu0 0.0
    %251 = vmatprep.subr.mxu0 0.0
    %252 = vmatpush1.msra.mxu0 0.0
    %253 = vmatprep.subr.mxu0 0.0
    %254 = vmatpush1.msra.mxu0 0.0
    %255 = vmatprep.subr.mxu0 0.0
    %256 = vmatpush1.msra.mxu0 0.0
    %257 = vmatprep.subr.mxu0 0.0
    %258 = vmatpush1.msra.mxu0 0.0
    %259 = vmatprep.subr.mxu0 0.0
    %260 = vmatpush1.msra.mxu0 0.0
    %261 = vmatprep.subr.mxu0 0.0
    %262 = vmatpush1.msra.mxu0 0.0
    %263 = vmatprep.subr.mxu0 0.0
    %264 = vmatpush1.msra.mxu0 0.0
    %265 = vmatprep.subr.mxu0 0.0
    %266 = vmatpush1.msra.mxu0 0.0
    %267 = vmatprep.subr.mxu0 0.0
    %268 = vmatpush1.msra.mxu0 0.0
    %269 = vmatprep.subr.mxu0 0.0
    %270 = vmatpush1.msra.mxu0 0.0
    %271 = vmatprep.subr.mxu0 0.0
    %272 = vmatpush1.msra.mxu0 0.0
    %273 = vmatprep.subr.mxu0 0.0
    %274 = vmatpush1.msra.mxu0 0.0
    %275 = vmatprep.subr.mxu0 0.0
    %276 = vmatpush1.msra.mxu0 0.0
    %277 = vmatprep.subr.mxu0 0.0
    %278 = vmatpush1.msra.mxu0 0.0
    %279 = vmatprep.subr.mxu0 0.0
    %280 = vmatpush1.msra.mxu0 0.0
    %281 = vmatprep.subr.mxu0 0.0
    %282 = vmatpush1.msra.mxu0 0.0
    %283 = vmatprep.subr.mxu0 0.0
    %284 = vmatpush1.msra.mxu0 0.0
    %285 = vmatprep.subr.mxu0 0.0
    %286 = vmatpush1.msra.mxu0 0.0
    %287 = vmatprep.subr.mxu0 0.0
    %288 = vmatpush1.msra.mxu0 0.0
    %289 = vmatprep.subr.mxu0 0.0
    %290 = vmatpush1.msra.mxu0 0.0
    %291 = vmatprep.mubr.f32.mxu0 0.0
    %292 = vmatmul.mubr.f32.gmra.mrb[0].mxu0 %v222
    %v293 = vpop.f32.mrb[0].mxu0
    %v294 = vadd.f32 %v219, %v293
    %v295 = vpop.f32.mrb[0].mxu0
    %296 = vmatprep.mubr.f32.mxu0 0.0
    %297 = vmatmul.mubr.f32.gmra.mrb[0].mxu0 %v225
    %v298 = vpop.f32.mrb[0].mxu0
    %v299 = vadd.f32 %v219, %v298
    %v300 = vpop.f32.mrb[0].mxu0
    %301 = vdwg.mxu0
    %v302 = vmax.f32 %v294, 0.0
    %v303 = vmax.f32 %v299, 0.0
    %306 = vrot.lane.b32.xlu0 %v302, 32
    %v307 = vpop.permute.xlu0 %306
    %308 = vrot.lane.b32.xlu0 %v303, 32
    %v309 = vpop.permute.xlu0 %308
    %v312 = vsel %vm204, %v186, %v307
    %v313 = vsel %vm204, %v191, %v309
    %v314 = vld [vmem:[%s3 + $0x40] sm:$0xff]
    %v315 = vld [vmem:[%s3 + $0x48] sm:$0xff]
    %v316 = vld [vmem:[%s3 + $0x50] sm:$0xff]
    %v317 = vld [vmem:[%s3 + $0x58] sm:$0xff]
    %v318 = vld [vmem:[%s3 + $0x60] sm:$0xff]
    %v319 = vld [vmem:[%s3 + $0x68] sm:$0xff]
    %v320 = vld [vmem:[%s3 + $0x70] sm:$0xff]
    %v321 = vld [vmem:[%s3 + $0x78] sm:$0xff]
    %v322 = vld [vmem:[%s4 + $0x1] sm:$0x1]
    %v323 = vlaneseq
    %v324 = vshrl.u32 %v323, 7
    %v325 = vsub.s32 0, %v324
    %v326 = vrot.slane %v322, %v325
    %v328 = vsel %vm220, %v312, 0
    %v331 = vsel %vm220, %v313, 0
    %333 = vmatprep.subr.mxu0 0.0
    %334 = vmatpush1.msra.mxu0 %v314
    %335 = vmatprep.subr.mxu0 0.0
    %336 = vmatpush1.msra.mxu0 %v315
    %337 = vmatprep.subr.mxu0 0.0
    %338 = vmatpush1.msra.mxu0 %v316
    %339 = vmatprep.subr.mxu0 0.0
    %340 = vmatpush1.msra.mxu0 %v317
    %341 = vmatprep.subr.mxu0 0.0
    %342 = vmatpush1.msra.mxu0 %v318
    %343 = vmatprep.subr.mxu0 0.0
    %344 = vmatpush1.msra.mxu0 %v319
    %345 = vmatprep.subr.mxu0 0.0
    %346 = vmatpush1.msra.mxu0 %v320
    %347 = vmatprep.subr.mxu0 0.0
    %348 = vmatpush1.msra.mxu0 %v321
    %349 = vmatprep.subr.mxu0 0.0
    %350 = vmatpush1.msra.mxu0 0.0
    %351 = vmatprep.subr.mxu0 0.0
    %352 = vmatpush1.msra.mxu0 0.0
    %353 = vmatprep.subr.mxu0 0.0
    %354 = vmatpush1.msra.mxu0 0.0
    %355 = vmatprep.subr.mxu0 0.0
    %356 = vmatpush1.msra.mxu0 0.0
    %357 = vmatprep.subr.mxu0 0.0
    %358 = vmatpush1.msra.mxu0 0.0
    %359 = vmatprep.subr.mxu0 0.0
    %360 = vmatpush1.msra.mxu0 0.0
    %361 = vmatprep.subr.mxu0 0.0
    %362 = vmatpush1.msra.mxu0 0.0
    %363 = vmatprep.subr.mxu0 0.0
    %364 = vmatpush1.msra.mxu0 0.0
    %365 = vmatprep.subr.mxu0 0.0
    %366 = vmatpush1.msra.mxu0 0.0
    %367 = vmatprep.subr.mxu0 0.0
    %368 = vmatpush1.msra.mxu0 0.0
    %369 = vmatprep.subr.mxu0 0.0
    %370 = vmatpush1.msra.mxu0 0.0
    %371 = vmatprep.subr.mxu0 0.0
    %372 = vmatpush1.msra.mxu0 0.0
    %373 = vmatprep.subr.mxu0 0.0
    %374 = vmatpush1.msra.mxu0 0.0
    %375 = vmatprep.subr.mxu0 0.0
    %376 = vmatpush1.msra.mxu0 0.0
    %377 = vmatprep.subr.mxu0 0.0
    %378 = vmatpush1.msra.mxu0 0.0
    %379 = vmatprep.subr.mxu0 0.0
    %380 = vmatpush1.msra.mxu0 0.0
    %381 = vmatprep.subr.mxu0 0.0
    %382 = vmatpush1.msra.mxu0 0.0
    %383 = vmatprep.subr.mxu0 0.0
    %384 = vmatpush1.msra.mxu0 0.0
    %385 = vmatprep.subr.mxu0 0.0
    %386 = vmatpush1.msra.mxu0 0.0
    %387 = vmatprep.subr.mxu0 0.0
    %388 = vmatpush1.msra.mxu0 0.0
    %389 = vmatprep.subr.mxu0 0.0
    %390 = vmatpush1.msra.mxu0 0.0
    %391 = vmatprep.subr.mxu0 0.0
    %392 = vmatpush1.msra.mxu0 0.0
    %393 = vmatprep.subr.mxu0 0.0
    %394 = vmatpush1.msra.mxu0 0.0
    %395 = vmatprep.subr.mxu0 0.0
    %396 = vmatpush1.msra.mxu0 0.0
    %397 = vmatprep.mubr.f32.mxu0 0.0
    %398 = vmatmul.mubr.f32.gmra.mrb[0].mxu0 %v328
    %v399 = vpop.f32.mrb[0].mxu0
    %v400 = vadd.f32 %v326, %v399
    %v401 = vpop.f32.mrb[0].mxu0
    %402 = vmatprep.mubr.f32.mxu0 0.0
    %403 = vmatmul.mubr.f32.gmra.mrb[0].mxu0 %v331
    %v404 = vpop.f32.mrb[0].mxu0
    %v405 = vadd.f32 %v326, %v404
    %v406 = vpop.f32.mrb[0].mxu0
    %407 = vdwg.mxu0
    %v408 = vld [vmem:[%s1 + $0x10] sm:$0xff]
    %409 = vset.pattern.permute.xlu0 0
    %410 = vperm.xlu0 %409, %v408
    %v411 = vpop.permute.xlu0 %410
    %vm412 = vcmp.eq.s32.totalorder %v411, %v27
    %v413 = vsel %vm412, 1, 0
    %v414 = vcvt.s32.f32 %v413
    %v415 = vadd.f32 %v414, 0.0
    %416 = vset.pattern.permute.xlu0 1
    %417 = vperm.xlu0 %416, %v408
    %v418 = vpop.permute.xlu0 %417
    %vm419 = vcmp.eq.s32.totalorder %v418, %v27
    %v420 = vsel %vm419, 1, 0
    %v421 = vcvt.s32.f32 %v420
    %v422 = vadd.f32 %v415, %v421
    %423 = vset.pattern.permute.xlu0 2
    %424 = vperm.xlu0 %423, %v408
    %v425 = vpop.permute.xlu0 %424
    %vm426 = vcmp.eq.s32.totalorder %v425, %v27
    %v427 = vsel %vm426, 1, 0
    %v428 = vcvt.s32.f32 %v427
    %v429 = vadd.f32 %v422, %v428
    %430 = vset.pattern.permute.xlu0 3
    %431 = vperm.xlu0 %430, %v408
    %v432 = vpop.permute.xlu0 %431
    %vm433 = vcmp.eq.s32.totalorder %v432, %v27
    %v434 = vsel %vm433, 1, 0
    %v435 = vcvt.s32.f32 %v434
    %v436 = vadd.f32 %v429, %v435
    %437 = vset.pattern.permute.xlu0 4
    %438 = vperm.xlu0 %437, %v408
    %v439 = vpop.permute.xlu0 %438
    %vm440 = vcmp.eq.s32.totalorder %v439, %v27
    %v441 = vsel %vm440, 1, 0
    %v442 = vcvt.s32.f32 %v441
    %vm443 = vcmask 130048
    %v445 = vsel %vm443, %v436, 0
    %v448 = vsel %vm443, %v442, 0
    %450 = vmatprep.subr.mxu0 0.0
    %451 = vmatpush1.msra.mxu0 %v400
    %452 = vmatprep.subr.mxu0 0.0
    %453 = vmatpush1.msra.mxu0 %v405
    %454 = vmatprep.subr.mxu0 0.0
    %455 = vmatpush1.msra.mxu0 0.0
    %456 = vmatprep.subr.mxu0 0.0
    %457 = vmatpush1.msra.mxu0 0.0
    %458 = vmatprep.subr.mxu0 0.0
    %459 = vmatpush1.msra.mxu0 0.0
    %460 = vmatprep.subr.mxu0 0.0
    %461 = vmatpush1.msra.mxu0 0.0
    %462 = vmatprep.subr.mxu0 0.0
    %463 = vmatpush1.msra.mxu0 0.0
    %464 = vmatprep.subr.mxu0 0.0
    %465 = vmatpush1.msra.mxu0 0.0
    %466 = vmatprep.subr.mxu0 0.0
    %467 = vmatpush1.msra.mxu0 0.0
    %468 = vmatprep.subr.mxu0 0.0
    %469 = vmatpush1.msra.mxu0 0.0
    %470 = vmatprep.subr.mxu0 0.0
    %471 = vmatpush1.msra.mxu0 0.0
    %472 = vmatprep.subr.mxu0 0.0
    %473 = vmatpush1.msra.mxu0 0.0
    %474 = vmatprep.subr.mxu0 0.0
    %475 = vmatpush1.msra.mxu0 0.0
    %476 = vmatprep.subr.mxu0 0.0
    %477 = vmatpush1.msra.mxu0 0.0
    %478 = vmatprep.subr.mxu0 0.0
    %479 = vmatpush1.msra.mxu0 0.0
    %480 = vmatprep.subr.mxu0 0.0
    %481 = vmatpush1.msra.mxu0 0.0
    %482 = vmatprep.subr.mxu0 0.0
    %483 = vmatpush1.msra.mxu0 0.0
    %484 = vmatprep.subr.mxu0 0.0
    %485 = vmatpush1.msra.mxu0 0.0
    %486 = vmatprep.subr.mxu0 0.0
    %487 = vmatpush1.msra.mxu0 0.0
    %488 = vmatprep.subr.mxu0 0.0
    %489 = vmatpush1.msra.mxu0 0.0
    %490 = vmatprep.subr.mxu0 0.0
    %491 = vmatpush1.msra.mxu0 0.0
    %492 = vmatprep.subr.mxu0 0.0
    %493 = vmatpush1.msra.mxu0 0.0
    %494 = vmatprep.subr.mxu0 0.0
    %495 = vmatpush1.msra.mxu0 0.0
    %496 = vmatprep.subr.mxu0 0.0
    %497 = vmatpush1.msra.mxu0 0.0
    %498 = vmatprep.subr.mxu0 0.0
    %499 = vmatpush1.msra.mxu0 0.0
    %500 = vmatprep.subr.mxu0 0.0
    %501 = vmatpush1.msra.mxu0 0.0
    %502 = vmatprep.subr.mxu0 0.0
    %503 = vmatpush1.msra.mxu0 0.0
    %504 = vmatprep.subr.mxu0 0.0
    %505 = vmatpush1.msra.mxu0 0.0
    %506 = vmatprep.subr.mxu0 0.0
    %507 = vmatpush1.msra.mxu0 0.0
    %508 = vmatprep.subr.mxu0 0.0
    %509 = vmatpush1.msra.mxu0 0.0
    %510 = vmatprep.subr.mxu0 0.0
    %511 = vmatpush1.msra.mxu0 0.0
    %512 = vmatprep.subr.mxu0 0.0
    %513 = vmatpush1.msra.mxu0 0.0
    %514 = vmatprep.mubr.f32.mxu0 0.0
    %515 = vmatmul.mubr.f32.gmra.mrb[0].mxu0 %v445
    %v516 = vpop.f32.mrb[0].mxu0
    %v517 = vadd.f32 0.0, %v516
    %v518 = vpop.f32.mrb[0].mxu0
    %519 = vmatprep.mubr.f32.mxu0 0.0
    %520 = vmatmul.mubr.f32.gmra.mrb[0].mxu0 %v448
    %v521 = vpop.f32.mrb[0].mxu0
    %v522 = vadd.f32 0.0, %v521
    %v523 = vpop.f32.mrb[0].mxu0
    %524 = vdwg.mxu0
    %v525 = vld [vmem:[%s2 + $0x10] sm:$0xff]
    %527 = vrot.lane.b32.xlu0 %v525, 32
    %v528 = vpop.permute.xlu0 %527
    %v530 = vsel %vm204, %v517, %v528
    %v531 = vld [vmem:[%s3 + $0x80] sm:$0xff]
    %v532 = vld [vmem:[%s3 + $0x88] sm:$0xff]
    %v533 = vld [vmem:[%s3 + $0x90] sm:$0xff]
    %v534 = vld [vmem:[%s3 + $0x98] sm:$0xff]
    %v535 = vld [vmem:[%s3 + $0xa0] sm:$0xff]
    %v536 = vld [vmem:[%s3 + $0xa8] sm:$0xff]
    %v537 = vld [vmem:[%s3 + $0xb0] sm:$0xff]
    %v538 = vld [vmem:[%s3 + $0xb8] sm:$0xff]
    %v539 = vld [vmem:[%s4 + $0x2] sm:$0x1]
    %v540 = vlaneseq
    %v541 = vshrl.u32 %v540, 7
    %v542 = vsub.s32 0, %v541
    %v543 = vrot.slane %v539, %v542
    %v545 = vsel %vm220, %v530, 0
    %547 = vmatprep.subr.mxu0 0.0
    %548 = vmatpush1.msra.mxu0 %v531
    %549 = vmatprep.subr.mxu0 0.0
    %550 = vmatpush1.msra.mxu0 %v532
    %551 = vmatprep.subr.mxu0 0.0
    %552 = vmatpush1.msra.mxu0 %v533
    %553 = vmatprep.subr.mxu0 0.0
    %554 = vmatpush1.msra.mxu0 %v534
    %555 = vmatprep.subr.mxu0 0.0
    %556 = vmatpush1.msra.mxu0 %v535
    %557 = vmatprep.subr.mxu0 0.0
    %558 = vmatpush1.msra.mxu0 %v536
    %559 = vmatprep.subr.mxu0 0.0
    %560 = vmatpush1.msra.mxu0 %v537
    %561 = vmatprep.subr.mxu0 0.0
    %562 = vmatpush1.msra.mxu0 %v538
    %563 = vmatprep.subr.mxu0 0.0
    %564 = vmatpush1.msra.mxu0 0.0
    %565 = vmatprep.subr.mxu0 0.0
    %566 = vmatpush1.msra.mxu0 0.0
    %567 = vmatprep.subr.mxu0 0.0
    %568 = vmatpush1.msra.mxu0 0.0
    %569 = vmatprep.subr.mxu0 0.0
    %570 = vmatpush1.msra.mxu0 0.0
    %571 = vmatprep.subr.mxu0 0.0
    %572 = vmatpush1.msra.mxu0 0.0
    %573 = vmatprep.subr.mxu0 0.0
    %574 = vmatpush1.msra.mxu0 0.0
    %575 = vmatprep.subr.mxu0 0.0
    %576 = vmatpush1.msra.mxu0 0.0
    %577 = vmatprep.subr.mxu0 0.0
    %578 = vmatpush1.msra.mxu0 0.0
    %579 = vmatprep.subr.mxu0 0.0
    %580 = vmatpush1.msra.mxu0 0.0
    %581 = vmatprep.subr.mxu0 0.0
    %582 = vmatpush1.msra.mxu0 0.0
    %583 = vmatprep.subr.mxu0 0.0
    %584 = vmatpush1.msra.mxu0 0.0
    %585 = vmatprep.subr.mxu0 0.0
    %586 = vmatpush1.msra.mxu0 0.0
    %587 = vmatprep.subr.mxu0 0.0
    %588 = vmatpush1.msra.mxu0 0.0
    %589 = vmatprep.subr.mxu0 0.0
    %590 = vmatpush1.msra.mxu0 0.0
    %591 = vmatprep.subr.mxu0 0.0
    %592 = vmatpush1.msra.mxu0 0.0
    %593 = vmatprep.subr.mxu0 0.0
    %594 = vmatpush1.msra.mxu0 0.0
    %595 = vmatprep.subr.mxu0 0.0
    %596 = vmatpush1.msra.mxu0 0.0
    %597 = vmatprep.subr.mxu0 0.0
    %598 = vmatpush1.msra.mxu0 0.0
    %599 = vmatprep.subr.mxu0 0.0
    %600 = vmatpush1.msra.mxu0 0.0
    %601 = vmatprep.subr.mxu0 0.0
    %602 = vmatpush1.msra.mxu0 0.0
    %603 = vmatprep.subr.mxu0 0.0
    %604 = vmatpush1.msra.mxu0 0.0
    %605 = vmatprep.subr.mxu0 0.0
    %606 = vmatpush1.msra.mxu0 0.0
    %607 = vmatprep.subr.mxu0 0.0
    %608 = vmatpush1.msra.mxu0 0.0
    %609 = vmatprep.subr.mxu0 0.0
    %610 = vmatpush1.msra.mxu0 0.0
    %611 = vmatprep.mubr.f32.mxu0 0.0
    %612 = vmatmul.mubr.f32.gmra.mrb[0].mxu0 %v545
    %v613 = vpop.f32.mrb[0].mxu0
    %v614 = vadd.f32 %v543, %v613
    %v615 = vpop.f32.mrb[0].mxu0
    %616 = vdwg.mxu0
    %v617 = vmax.f32 %v614, 0.0
    %619 = vrot.lane.b32.xlu0 %v617, 32
    %v620 = vpop.permute.xlu0 %619
    %v622 = vsel %vm204, %v522, %v620
    %v623 = vld [vmem:[%s3 + $0xc0] sm:$0xff]
    %v624 = vld [vmem:[%s3 + $0xc8] sm:$0xff]
    %v625 = vld [vmem:[%s3 + $0xd0] sm:$0xff]
    %v626 = vld [vmem:[%s3 + $0xd8] sm:$0xff]
    %v627 = vld [vmem:[%s3 + $0xe0] sm:$0xff]
    %v628 = vld [vmem:[%s3 + $0xe8] sm:$0xff]
    %v629 = vld [vmem:[%s3 + $0xf0] sm:$0xff]
    %v630 = vld [vmem:[%s3 + $0xf8] sm:$0xff]
    %v631 = vld [vmem:[%s4 + $0x3] sm:$0x1]
    %v632 = vlaneseq
    %v633 = vshrl.u32 %v632, 7
    %v634 = vsub.s32 0, %v633
    %v635 = vrot.slane %v631, %v634
    %v637 = vsel %vm220, %v622, 0
    %639 = vmatprep.subr.mxu0 0.0
    %640 = vmatpush1.msra.mxu0 %v623
    %641 = vmatprep.subr.mxu0 0.0
    %642 = vmatpush1.msra.mxu0 %v624
    %643 = vmatprep.subr.mxu0 0.0
    %644 = vmatpush1.msra.mxu0 %v625
    %645 = vmatprep.subr.mxu0 0.0
    %646 = vmatpush1.msra.mxu0 %v626
    %647 = vmatprep.subr.mxu0 0.0
    %648 = vmatpush1.msra.mxu0 %v627
    %649 = vmatprep.subr.mxu0 0.0
    %650 = vmatpush1.msra.mxu0 %v628
    %651 = vmatprep.subr.mxu0 0.0
    %652 = vmatpush1.msra.mxu0 %v629
    %653 = vmatprep.subr.mxu0 0.0
    %654 = vmatpush1.msra.mxu0 %v630
    %655 = vmatprep.subr.mxu0 0.0
    %656 = vmatpush1.msra.mxu0 0.0
    %657 = vmatprep.subr.mxu0 0.0
    %658 = vmatpush1.msra.mxu0 0.0
    %659 = vmatprep.subr.mxu0 0.0
    %660 = vmatpush1.msra.mxu0 0.0
    %661 = vmatprep.subr.mxu0 0.0
    %662 = vmatpush1.msra.mxu0 0.0
    %663 = vmatprep.subr.mxu0 0.0
    %664 = vmatpush1.msra.mxu0 0.0
    %665 = vmatprep.subr.mxu0 0.0
    %666 = vmatpush1.msra.mxu0 0.0
    %667 = vmatprep.subr.mxu0 0.0
    %668 = vmatpush1.msra.mxu0 0.0
    %669 = vmatprep.subr.mxu0 0.0
    %670 = vmatpush1.msra.mxu0 0.0
    %671 = vmatprep.subr.mxu0 0.0
    %672 = vmatpush1.msra.mxu0 0.0
    %673 = vmatprep.subr.mxu0 0.0
    %674 = vmatpush1.msra.mxu0 0.0
    %675 = vmatprep.subr.mxu0 0.0
    %676 = vmatpush1.msra.mxu0 0.0
    %677 = vmatprep.subr.mxu0 0.0
    %678 = vmatpush1.msra.mxu0 0.0
    %679 = vmatprep.subr.mxu0 0.0
    %680 = vmatpush1.msra.mxu0 0.0
    %681 = vmatprep.subr.mxu0 0.0
    %682 = vmatpush1.msra.mxu0 0.0
    %683 = vmatprep.subr.mxu0 0.0
    %684 = vmatpush1.msra.mxu0 0.0
    %685 = vmatprep.subr.mxu0 0.0
    %686 = vmatpush1.msra.mxu0 0.0
    %687 = vmatprep.subr.mxu0 0.0
    %688 = vmatpush1.msra.mxu0 0.0
    %689 = vmatprep.subr.mxu0 0.0
    %690 = vmatpush1.msra.mxu0 0.0
    %691 = vmatprep.subr.mxu0 0.0
    %692 = vmatpush1.msra.mxu0 0.0
    %693 = vmatprep.subr.mxu0 0.0
    %694 = vmatpush1.msra.mxu0 0.0
    %695 = vmatprep.subr.mxu0 0.0
    %696 = vmatpush1.msra.mxu0 0.0
    %697 = vmatprep.subr.mxu0 0.0
    %698 = vmatpush1.msra.mxu0 0.0
    %699 = vmatprep.subr.mxu0 0.0
    %700 = vmatpush1.msra.mxu0 0.0
    %701 = vmatprep.subr.mxu0 0.0
    %702 = vmatpush1.msra.mxu0 0.0
    %703 = vmatprep.mubr.f32.mxu0 0.0
    %704 = vmatmul.mubr.f32.gmra.mrb[0].mxu0 %v637
    %v705 = vpop.f32.mrb[0].mxu0
    %v706 = vadd.f32 %v635, %v705
    %v707 = vpop.f32.mrb[0].mxu0
    %708 = vdwg.mxu0
    %709 = vst.msk [vmem:[#allocation2] sm:$0xff] %vm204, %v706
    // Predicated region
    $region22: #{tpu_custom_call.1} parent=1 // pred_check
      _
    $region23: #{tpu_custom_call.1} parent=1 // pred_check_branch
      %711 = sbr.rel (0) target = $region25
    $region24: #{tpu_custom_call.1} parent=1 // pred_region
      %s713 = ssub.s32 128, 128
      %714 = vsyncadd [#allocation3], %s713
      %s716 = sshll.u32 [#allocation2], 4
      %s717 = int_to_ptr.vmem [resolvable:$true] %s716
      %719 = dma.vmem_to_hbm [thread:$0]  %s717, 128, %s5, [#allocation3]
    $region25: #{tpu_custom_call.1} parent=1 // pred_fallthru
      _
    // Predicated region
    $region26: #{tpu_custom_call.1} parent=1 // pred_check
      _
    $region27: #{tpu_custom_call.1} parent=1 // pred_check_branch
      %721 = sbr.rel (0) target = $region29
    $region28: #{tpu_custom_call.1} parent=1 // pred_region
      %722 = dma.done [#allocation3], 128
    $region29: #{tpu_custom_call.1} parent=1 // pred_fallthru
      _
    %723 = vsyncpa [#allocation3], 1

</llo_original>
